<compile_context>
chip_gen: v6e
topology: v6e:2x2x1
jax: 0.10.0
libtpu: 0.0.40
codegen_flags: <defaults>
</compile_context>

<pallas_src>
import jax
import jax.numpy as jnp
from jax.experimental import pallas as pl
from jax.experimental.pallas import tpu as pltpu

# ----------------------------- model config ---------------------------------
B = 2           # batch
C_IN = 4        # input channels
H = W = 16      # spatial
C_OUT = 32      # stem conv output channels
K = 3           # conv kernel size
NUM_CLASSES = 8
HW = H * W
EPS = 1e-5
KDIM = K * K * C_IN + 1   # 36 conv taps + 1 ones column carrying the BN shift
CLS_PAD = 128             # lane-dense class axis


# ------------------------------ Pallas kernel --------------------------------
def _timm_forward_kernel(patches_ref, wtaps_ref, pool_ref, wfc_ref, fcb_ref,
                         out_ref):
    # conv3x3 (SAME) + inference BN + ReLU as ONE MXU matmul:
    # BN scale is folded into wtaps rows 0..35, BN shift rides on the ones
    # column (row 36), so the dot directly yields the pre-activation.
    h = jnp.maximum(
        jnp.dot(patches_ref[...], wtaps_ref[...],
                preferred_element_type=jnp.float32),
        0.0)                                                   # [B*HW, Cout]

    # global average pool as an MXU matmul with a precomputed block-row
    # indicator matrix (1/HW folded into wfc) -- keeps the reduction off
    # VPU/XLU and off the serial tail.
    pooled = jnp.dot(pool_ref[...], h,
                     preferred_element_type=jnp.float32)       # [B, Cout]

    # classifier head, lane-dense (classes padded to 128); full-width bias add
    logits = jnp.dot(pooled, wfc_ref[...],
                     preferred_element_type=jnp.float32)       # [B, 128]
    out_ref[...] = (logits + fcb_ref[...]).astype(out_ref.dtype)


# ------------------------- one-time parameter packing ------------------------
def prepack_params(conv_w, bn_gamma, bn_beta, bn_mean, bn_var, fc_w, fc_b):
    """Model-load-time repacking; NOT in the per-call hot path."""
    scale = bn_gamma / jnp.sqrt(bn_var + EPS)                        # [Cout]
    shift = bn_beta - bn_mean * scale                                # [Cout]
    # conv weight [Cout, Cin, K, K] -> [(dy,dx,cin), Cout], BN scale folded in;
    # BN shift appended as the last row (paired with the im2col ones column).
    wt = jnp.transpose(conv_w, (2, 3, 1, 0)).reshape(K * K * C_IN, C_OUT)
    wt = wt * scale[None, :]
    wtaps = jnp.concatenate([wt, shift[None, :]], axis=0)            # [37, 32]
    wtaps = wtaps.astype(jnp.float32)

    # classifier [classes, Cout] -> [Cout, 128]; fold 1/HW pooling factor,
    # zero-pad class axis to 128 lanes (extra MXU columns are free).
    wfc = jnp.zeros((C_OUT, CLS_PAD), jnp.float32)
    wfc = wfc.at[:, :NUM_CLASSES].set(
        (jnp.transpose(fc_w, (1, 0)) / float(HW)).astype(jnp.float32))
    fcb = jnp.zeros((1, CLS_PAD), jnp.float32)
    fcb = fcb.at[0, :NUM_CLASSES].set(fc_b.astype(jnp.float32))

    # constant global-average-pool indicator matrix [B, B*HW].
    row = jax.lax.broadcasted_iota(jnp.int32, (B, B * HW), 0)
    col = jax.lax.broadcasted_iota(jnp.int32, (B, B * HW), 1)
    pool = (col // HW == row).astype(jnp.float32)                    # [2, 512]
    return wtaps, pool, wfc, fcb


# --------------------------------- forward -----------------------------------
@jax.jit
def timm_forward(x_nchw, wtaps, pool, wfc, fcb):
    """x_nchw: [B, Cin, H, W] float32 (PyTorch layout) -> logits [B, classes]."""
    # NCHW -> NHWC, SAME zero padding, and lane-dense im2col (per perf review
    # the ~76 KB f32 patch matrix is cheaper than 9 in-kernel relayouts).
    x = jnp.transpose(x_nchw, (0, 2, 3, 1)).astype(jnp.float32)
    xpad = jnp.pad(x, ((0, 0), (1, 1), (1, 1), (0, 0)))   # [B, H+2, W+2, Cin]
    cols = jnp.concatenate(
        [xpad[:, dy:dy + H, dx:dx + W, :] for dy in range(K) for dx in range(K)],
        axis=-1)                                           # [B, H, W, 36]
    patches = cols.reshape(B * HW, K * K * C_IN)
    patches = jnp.concatenate(
        [patches, jnp.ones((B * HW, 1), jnp.float32)], axis=-1)  # [512, 37]

    out = pl.pallas_call(
        _timm_forward_kernel,
        out_shape=jax.ShapeDtypeStruct((B, CLS_PAD), jnp.float32),
        in_specs=[pl.BlockSpec(memory_space=pltpu.MemorySpace.VMEM)] * 5,
        out_specs=pl.BlockSpec(memory_space=pltpu.MemorySpace.VMEM),
    )(patches, wtaps, pool, wfc, fcb)
    return out[:, :NUM_CLASSES]


# ------------------------------- reference -----------------------------------
def timm_forward_ref(x_nchw, conv_w, bn_gamma, bn_beta, bn_mean, bn_var,
                     fc_w, fc_b):
    x = jnp.transpose(x_nchw, (0, 2, 3, 1))
    y = jax.lax.conv_general_dilated(
        x, jnp.transpose(conv_w, (2, 3, 1, 0)),
        window_strides=(1, 1), padding="SAME",
        dimension_numbers=("NHWC", "HWIO", "NHWC"))
    scale = bn_gamma / jnp.sqrt(bn_var + EPS)
    y = y * scale + (bn_beta - bn_mean * scale)
    y = jnp.maximum(y, 0.0)
    pooled = jnp.mean(y, axis=(1, 2))
    return pooled @ fc_w.T + fc_b


# --------------------------------- main ---------------------------------------
if __name__ == "__main__":
    key = jax.random.PRNGKey(0)
    ks = jax.random.split(key, 8)

    x = jax.random.normal(ks[0], (B, C_IN, H, W), dtype=jnp.float32)

    # Deterministic synthetic parameters (shapes of a tiny timm-style model).
    conv_w = 0.1 * jax.random.normal(ks[1], (C_OUT, C_IN, K, K), jnp.float32)
    bn_gamma = 1.0 + 0.05 * jax.random.normal(ks[2], (C_OUT,), jnp.float32)
    bn_beta = 0.05 * jax.random.normal(ks[3], (C_OUT,), jnp.float32)
    bn_mean = 0.05 * jax.random.normal(ks[4], (C_OUT,), jnp.float32)
    bn_var = jnp.abs(1.0 + 0.05 * jax.random.normal(ks[5], (C_OUT,),
                                                    jnp.float32))
    fc_w = 0.1 * jax.random.normal(ks[6], (NUM_CLASSES, C_OUT), jnp.float32)
    fc_b = 0.05 * jax.random.normal(ks[7], (NUM_CLASSES,), jnp.float32)

    # One-time weight / constant repacking (hoisted out of the per-call path).
    wtaps, pool, wfc, fcb = prepack_params(conv_w, bn_gamma, bn_beta, bn_mean,
                                           bn_var, fc_w, fc_b)
    wtaps, pool, wfc, fcb = jax.block_until_ready((wtaps, pool, wfc, fcb))

    out = timm_forward(x, wtaps, pool, wfc, fcb)
    out = jax.block_until_ready(out)

    ref = timm_forward_ref(x, conv_w, bn_gamma, bn_beta, bn_mean, bn_var,
                           fc_w, fc_b)
    assert out.shape == (B, NUM_CLASSES)
    assert jnp.allclose(out, ref, atol=1e-4, rtol=1e-4), (
        "mismatch vs reference")

    print("KERNEL_OK")
</pallas_src>

<mosaic_0001>
module attributes {stable_mosaic.version = 11 : i64} {
  func.func @_timm_forward_kernel(%arg0: memref<512x37xf32, #tpu.memory_space<vmem>>, %arg1: memref<37x32xf32, #tpu.memory_space<vmem>>, %arg2: memref<2x512xf32, #tpu.memory_space<vmem>>, %arg3: memref<32x128xf32, #tpu.memory_space<vmem>>, %arg4: memref<1x128xf32, #tpu.memory_space<vmem>>, %arg5: memref<2x128xf32, #tpu.memory_space<vmem>>) attributes {dimension_semantics = [], scalar_prefetch = 0 : i64, scratch_operands = 0 : i64, tpu.core_type = #tpu.core_type<tc>} {
    %c0 = arith.constant 0 : index
    %c0_0 = arith.constant 0 : index
    %0 = vector.load %arg0[%c0, %c0_0] : memref<512x37xf32, #tpu.memory_space<vmem>>, vector<512x37xf32>
    %c0_1 = arith.constant 0 : index
    %c0_2 = arith.constant 0 : index
    %1 = vector.load %arg1[%c0_1, %c0_2] : memref<37x32xf32, #tpu.memory_space<vmem>>, vector<37x32xf32>
    %cst = arith.constant dense<0.000000e+00> : vector<512x32xf32>
    %2 = tpu.matmul %0, %1, %cst {dimension_numbers = #tpu.dot_dimension_numbers<[1], [0], [0], [1], [0, 0, 1, 1], [], []>} : vector<512x37xf32>, vector<37x32xf32>, vector<512x32xf32> -> vector<512x32xf32>
    %cst_3 = arith.constant 0.000000e+00 : f32
    %3 = vector.broadcast %cst_3 : f32 to vector<512x32xf32>
    %4 = arith.maximumf %2, %3 : vector<512x32xf32>
    %c0_4 = arith.constant 0 : index
    %c0_5 = arith.constant 0 : index
    %5 = vector.load %arg2[%c0_4, %c0_5] : memref<2x512xf32, #tpu.memory_space<vmem>>, vector<2x512xf32>
    %cst_6 = arith.constant dense<0.000000e+00> : vector<2x32xf32>
    %6 = tpu.matmul %5, %4, %cst_6 {dimension_numbers = #tpu.dot_dimension_numbers<[1], [0], [0], [1], [0, 0, 1, 1], [], []>} : vector<2x512xf32>, vector<512x32xf32>, vector<2x32xf32> -> vector<2x32xf32>
    %c0_7 = arith.constant 0 : index
    %c0_8 = arith.constant 0 : index
    %7 = vector.load %arg3[%c0_7, %c0_8] : memref<32x128xf32, #tpu.memory_space<vmem>>, vector<32x128xf32>
    %cst_9 = arith.constant dense<0.000000e+00> : vector<2x128xf32>
    %8 = tpu.matmul %6, %7, %cst_9 {dimension_numbers = #tpu.dot_dimension_numbers<[1], [0], [0], [1], [0, 0, 1, 1], [], []>} : vector<2x32xf32>, vector<32x128xf32>, vector<2x128xf32> -> vector<2x128xf32>
    %c0_10 = arith.constant 0 : index
    %c0_11 = arith.constant 0 : index
    %9 = vector.load %arg4[%c0_10, %c0_11] : memref<1x128xf32, #tpu.memory_space<vmem>>, vector<1x128xf32>
    %10 = vector.broadcast %9 : vector<1x128xf32> to vector<2x128xf32>
    %11 = arith.addf %8, %10 : vector<2x128xf32>
    %c0_12 = arith.constant 0 : index
    %c0_13 = arith.constant 0 : index
    %12 = vector.load %arg5[%c0_12, %c0_13] : memref<2x128xf32, #tpu.memory_space<vmem>>, vector<2x128xf32>
    tpu.vector_store %arg5[%c0_12, %c0_13], %11 {strides = array<i32>} : memref<2x128xf32, #tpu.memory_space<vmem>>, vector<2x128xf32>,
    return
  }
}

</mosaic_0001>

<llo_original>
// kernel: timm_forward.1
$region0: #{timm_forward.1}
  #allocation0 [shape = 'u32[]', space=smem, size = 0x4, offset = 0x4, fixed_abs, tag = 'smem constant byte address 0x4 - core index']
  #allocation1 [shape = 'u32[144,128]{1,0:T(1,128)}', space=vmem, size = 0x12000, scoped, tag = 'internal scratch']
  %s0 = inlined_call_operand.vmem [shape: f32[512,37], index: 0, kind: input, shape index: {}]
  %s1 = inlined_call_operand.vmem [shape: f32[37,32], index: 1, kind: input, shape index: {}]
  %s2 = inlined_call_operand.vmem [shape: f32[2,512], index: 2, kind: input, shape index: {}]
  %s3 = inlined_call_operand.vmem [shape: f32[32,128], index: 3, kind: input, shape index: {}]
  %s4 = inlined_call_operand.vmem [shape: f32[1,128], index: 4, kind: input, shape index: {}]
  %s5 = inlined_call_operand.hbm [shape: f32[2,128], index: 5, kind: output, shape index: {}]
  %s6 = sld [smem:[#allocation0]]
  $region30: #{timm_forward.1} parent=0
    _
  %s8 = ssub.s32 1, %s6
  %s9 = scalar_select 0, %s8, %s6
  $region1: #{timm_forward.1} parent=0
    #allocation2 [shape = 'u8[1024]{0}', space=vmem, size = 0x400, scoped, tag = 'output window, operand 0, single buffered']
    #allocation3 [shape = 's32[1]{0}', space=sflag, size = 0x4, scoped, tag = 'scoped memory for timm_forward.1']
    %10 = vsyncpa [#allocation3], 0
    // Predicated region
    $region2: #{timm_forward.1} parent=1 // pred_check
      _
    $region3: #{timm_forward.1} parent=1 // pred_check_branch
      %12 = sbr.rel (0) target = $region5
    $region4: #{timm_forward.1} parent=1 // pred_region
      _
    $region5: #{timm_forward.1} parent=1 // pred_fallthru
      _
    // Predicated region
    $region6: #{timm_forward.1} parent=1 // pred_check
      _
    $region7: #{timm_forward.1} parent=1 // pred_check_branch
      %14 = sbr.rel (0) target = $region9
    $region8: #{timm_forward.1} parent=1 // pred_region
      _
    $region9: #{timm_forward.1} parent=1 // pred_fallthru
      _
    // Predicated region
    $region10: #{timm_forward.1} parent=1 // pred_check
      _
    $region11: #{timm_forward.1} parent=1 // pred_check_branch
      %16 = sbr.rel (0) target = $region13
    $region12: #{timm_forward.1} parent=1 // pred_region
      _
    $region13: #{timm_forward.1} parent=1 // pred_fallthru
      _
    // Predicated region
    $region14: #{timm_forward.1} parent=1 // pred_check
      _
    $region15: #{timm_forward.1} parent=1 // pred_check_branch
      %18 = sbr.rel (0) target = $region17
    $region16: #{timm_forward.1} parent=1 // pred_region
      _
    $region17: #{timm_forward.1} parent=1 // pred_fallthru
      _
    // Predicated region
    $region18: #{timm_forward.1} parent=1 // pred_check
      _
    $region19: #{timm_forward.1} parent=1 // pred_check_branch
      %20 = sbr.rel (0) target = $region21
    $region20: #{timm_forward.1} parent=1 // pred_region
      _
    $region21: #{timm_forward.1} parent=1 // pred_fallthru
      _
    %v21 = vld [vmem:[%s0] sm:$0xff]
    %v22 = vld [vmem:[%s0 + $0x8] sm:$0xff]
    %v23 = vld [vmem:[%s0 + $0x10] sm:$0xff]
    %v24 = vld [vmem:[%s0 + $0x18] sm:$0xff]
    %v25 = vld [vmem:[%s0 + $0x20] sm:$0xff]
    %v26 = vld [vmem:[%s0 + $0x28] sm:$0xff]
    %v27 = vld [vmem:[%s0 + $0x30] sm:$0xff]
    %v28 = vld [vmem:[%s0 + $0x38] sm:$0xff]
    %v29 = vld [vmem:[%s0 + $0x40] sm:$0xff]
    %v30 = vld [vmem:[%s0 + $0x48] sm:$0xff]
    %v31 = vld [vmem:[%s0 + $0x50] sm:$0xff]
    %v32 = vld [vmem:[%s0 + $0x58] sm:$0xff]
    %v33 = vld [vmem:[%s0 + $0x60] sm:$0xff]
    %v34 = vld [vmem:[%s0 + $0x68] sm:$0xff]
    %v35 = vld [vmem:[%s0 + $0x70] sm:$0xff]
    %v36 = vld [vmem:[%s0 + $0x78] sm:$0xff]
    %v37 = vld [vmem:[%s0 + $0x80] sm:$0xff]
    %v38 = vld [vmem:[%s0 + $0x88] sm:$0xff]
    %v39 = vld [vmem:[%s0 + $0x90] sm:$0xff]
    %v40 = vld [vmem:[%s0 + $0x98] sm:$0xff]
    %v41 = vld [vmem:[%s0 + $0xa0] sm:$0xff]
    %v42 = vld [vmem:[%s0 + $0xa8] sm:$0xff]
    %v43 = vld [vmem:[%s0 + $0xb0] sm:$0xff]
    %v44 = vld [vmem:[%s0 + $0xb8] sm:$0xff]
    %v45 = vld [vmem:[%s0 + $0xc0] sm:$0xff]
    %v46 = vld [vmem:[%s0 + $0xc8] sm:$0xff]
    %v47 = vld [vmem:[%s0 + $0xd0] sm:$0xff]
    %v48 = vld [vmem:[%s0 + $0xd8] sm:$0xff]
    %v49 = vld [vmem:[%s0 + $0xe0] sm:$0xff]
    %v50 = vld [vmem:[%s0 + $0xe8] sm:$0xff]
    %v51 = vld [vmem:[%s0 + $0xf0] sm:$0xff]
    %v52 = vld [vmem:[%s0 + $0xf8] sm:$0xff]
    %v53 = vld [vmem:[%s0 + $0x100] sm:$0xff]
    %v54 = vld [vmem:[%s0 + $0x108] sm:$0xff]
    %v55 = vld [vmem:[%s0 + $0x110] sm:$0xff]
    %v56 = vld [vmem:[%s0 + $0x118] sm:$0xff]
    %v57 = vld [vmem:[%s0 + $0x120] sm:$0xff]
    %v58 = vld [vmem:[%s0 + $0x128] sm:$0xff]
    %v59 = vld [vmem:[%s0 + $0x130] sm:$0xff]
    %v60 = vld [vmem:[%s0 + $0x138] sm:$0xff]
    %v61 = vld [vmem:[%s0 + $0x140] sm:$0xff]
    %v62 = vld [vmem:[%s0 + $0x148] sm:$0xff]
    %v63 = vld [vmem:[%s0 + $0x150] sm:$0xff]
    %v64 = vld [vmem:[%s0 + $0x158] sm:$0xff]
    %v65 = vld [vmem:[%s0 + $0x160] sm:$0xff]
    %v66 = vld [vmem:[%s0 + $0x168] sm:$0xff]
    %v67 = vld [vmem:[%s0 + $0x170] sm:$0xff]
    %v68 = vld [vmem:[%s0 + $0x178] sm:$0xff]
    %v69 = vld [vmem:[%s0 + $0x180] sm:$0xff]
    %v70 = vld [vmem:[%s0 + $0x188] sm:$0xff]
    %v71 = vld [vmem:[%s0 + $0x190] sm:$0xff]
    %v72 = vld [vmem:[%s0 + $0x198] sm:$0xff]
    %v73 = vld [vmem:[%s0 + $0x1a0] sm:$0xff]
    %v74 = vld [vmem:[%s0 + $0x1a8] sm:$0xff]
    %v75 = vld [vmem:[%s0 + $0x1b0] sm:$0xff]
    %v76 = vld [vmem:[%s0 + $0x1b8] sm:$0xff]
    %v77 = vld [vmem:[%s0 + $0x1c0] sm:$0xff]
    %v78 = vld [vmem:[%s0 + $0x1c8] sm:$0xff]
    %v79 = vld [vmem:[%s0 + $0x1d0] sm:$0xff]
    %v80 = vld [vmem:[%s0 + $0x1d8] sm:$0xff]
    %v81 = vld [vmem:[%s0 + $0x1e0] sm:$0xff]
    %v82 = vld [vmem:[%s0 + $0x1e8] sm:$0xff]
    %v83 = vld [vmem:[%s0 + $0x1f0] sm:$0xff]
    %v84 = vld [vmem:[%s0 + $0x1f8] sm:$0xff]
    %v85 = vld [vmem:[%s1] sm:$0xff]
    %v86 = vld [vmem:[%s1 + $0x8] sm:$0xff]
    %v87 = vld [vmem:[%s1 + $0x10] sm:$0xff]
    %v88 = vld [vmem:[%s1 + $0x18] sm:$0xff]
    %v89 = vld [vmem:[%s1 + $0x20] sm:$0x1f]
    %vm90 = vcmask 302080
    %v92 = vsel %vm90, %v21, 0
    %v95 = vsel %vm90, %v22, 0
    %v98 = vsel %vm90, %v23, 0
    %v101 = vsel %vm90, %v24, 0
    %v104 = vsel %vm90, %v25, 0
    %v107 = vsel %vm90, %v26, 0
    %v110 = vsel %vm90, %v27, 0
    %v113 = vsel %vm90, %v28, 0
    %v116 = vsel %vm90, %v29, 0
    %v119 = vsel %vm90, %v30, 0
    %v122 = vsel %vm90, %v31, 0
    %v125 = vsel %vm90, %v32, 0
    %v128 = vsel %vm90, %v33, 0
    %v131 = vsel %vm90, %v34, 0
    %v134 = vsel %vm90, %v35, 0
    %v137 = vsel %vm90, %v36, 0
    %v140 = vsel %vm90, %v37, 0
    %v143 = vsel %vm90, %v38, 0
    %v146 = vsel %vm90, %v39, 0
    %v149 = vsel %vm90, %v40, 0
    %v152 = vsel %vm90, %v41, 0
    %v155 = vsel %vm90, %v42, 0
    %v158 = vsel %vm90, %v43, 0
    %v161 = vsel %vm90, %v44, 0
    %v164 = vsel %vm90, %v45, 0
    %v167 = vsel %vm90, %v46, 0
    %v170 = vsel %vm90, %v47, 0
    %v173 = vsel %vm90, %v48, 0
    %v176 = vsel %vm90, %v49, 0
    %v179 = vsel %vm90, %v50, 0
    %v182 = vsel %vm90, %v51, 0
    %v185 = vsel %vm90, %v52, 0
    %v188 = vsel %vm90, %v53, 0
    %v191 = vsel %vm90, %v54, 0
    %v194 = vsel %vm90, %v55, 0
    %v197 = vsel %vm90, %v56, 0
    %v200 = vsel %vm90, %v57, 0
    %v203 = vsel %vm90, %v58, 0
    %v206 = vsel %vm90, %v59, 0
    %v209 = vsel %vm90, %v60, 0
    %v212 = vsel %vm90, %v61, 0
    %v215 = vsel %vm90, %v62, 0
    %v218 = vsel %vm90, %v63, 0
    %v221 = vsel %vm90, %v64, 0
    %v224 = vsel %vm90, %v65, 0
    %v227 = vsel %vm90, %v66, 0
    %v230 = vsel %vm90, %v67, 0
    %v233 = vsel %vm90, %v68, 0
    %v236 = vsel %vm90, %v69, 0
    %v239 = vsel %vm90, %v70, 0
    %v242 = vsel %vm90, %v71, 0
    %v245 = vsel %vm90, %v72, 0
    %v248 = vsel %vm90, %v73, 0
    %v251 = vsel %vm90, %v74, 0
    %v254 = vsel %vm90, %v75, 0
    %v257 = vsel %vm90, %v76, 0
    %v260 = vsel %vm90, %v77, 0
    %v263 = vsel %vm90, %v78, 0
    %v266 = vsel %vm90, %v79, 0
    %v269 = vsel %vm90, %v80, 0
    %v272 = vsel %vm90, %v81, 0
    %v275 = vsel %vm90, %v82, 0
    %v278 = vsel %vm90, %v83, 0
    %v281 = vsel %vm90, %v84, 0
    %vm283 = vcmask 1044480
    %v285 = vsel %vm283, %v89, 0
    %287 = vmatprep.subr.mxu0 0.0
    %288 = vmatpush1.msra.mxu0 0.0
    %289 = vmatprep.subr.mxu0 0.0
    %290 = vmatpush1.msra.mxu0 0.0
    %291 = vmatprep.subr.mxu0 0.0
    %292 = vmatpush1.msra.mxu0 0.0
    %293 = vmatprep.subr.mxu0 0.0
    %294 = vmatpush1.msra.mxu0 0.0
    %295 = vmatprep.subr.mxu0 0.0
    %296 = vmatpush1.msra.mxu0 0.0
    %297 = vmatprep.subr.mxu0 0.0
    %298 = vmatpush1.msra.mxu0 0.0
    %299 = vmatprep.subr.mxu0 0.0
    %300 = vmatpush1.msra.mxu0 0.0
    %301 = vmatprep.subr.mxu0 0.0
    %302 = vmatpush1.msra.mxu0 0.0
    %303 = vmatprep.subr.mxu0 0.0
    %304 = vmatpush1.msra.mxu0 0.0
    %305 = vmatprep.subr.mxu0 0.0
    %306 = vmatpush1.msra.mxu0 0.0
    %307 = vmatprep.subr.mxu0 0.0
    %308 = vmatpush1.msra.mxu0 0.0
    %309 = vmatprep.subr.mxu0 0.0
    %310 = vmatpush1.msra.mxu0 %v285
    %311 = vmatprep.subr.mxu0 0.0
    %312 = vmatpush1.msra.mxu0 %v88
    %313 = vmatprep.subr.mxu0 0.0
    %314 = vmatpush1.msra.mxu0 %v87
    %315 = vmatprep.subr.mxu0 0.0
    %316 = vmatpush1.msra.mxu0 %v86
    %317 = vmatprep.subr.mxu0 0.0
    %318 = vmatpush1.msra.mxu0 %v85
    %319 = vmatprep.subr.mxu0 0.0
    %320 = vmatpush2.msra.mxu0 0.0
    %321 = vmatprep.subr.mxu0 0.0
    %322 = vmatpush2.msra.mxu0 0.0
    %323 = vmatprep.subr.mxu0 0.0
    %324 = vmatpush2.msra.mxu0 0.0
    %325 = vmatprep.subr.mxu0 0.0
    %326 = vmatpush2.msra.mxu0 0.0
    %327 = vmatprep.subr.mxu0 0.0
    %328 = vmatpush2.msra.mxu0 0.0
    %329 = vmatprep.subr.mxu0 0.0
    %330 = vmatpush2.msra.mxu0 0.0
    %331 = vmatprep.subr.mxu0 0.0
    %332 = vmatpush2.msra.mxu0 0.0
    %333 = vmatprep.subr.mxu0 0.0
    %334 = vmatpush2.msra.mxu0 0.0
    %335 = vmatprep.subr.mxu0 0.0
    %336 = vmatpush2.msra.mxu0 0.0
    %337 = vmatprep.subr.mxu0 0.0
    %338 = vmatpush2.msra.mxu0 0.0
    %339 = vmatprep.subr.mxu0 0.0
    %340 = vmatpush2.msra.mxu0 0.0
    %341 = vmatprep.subr.mxu0 0.0
    %342 = vmatpush2.msra.mxu0 0.0
    %343 = vmatprep.subr.mxu0 0.0
    %344 = vmatpush2.msra.mxu0 0.0
    %345 = vmatprep.subr.mxu0 0.0
    %346 = vmatpush2.msra.mxu0 0.0
    %347 = vmatprep.subr.mxu0 0.0
    %348 = vmatpush2.msra.mxu0 0.0
    %349 = vmatprep.subr.mxu0 0.0
    %350 = vmatpush2.msra.mxu0 0.0
    %351 = vmatprep.mubr.f32.mxu0 0.0
    %352 = vmatmul.mubr.f32.gmra.mxu0 %v92
    %v353 = vpop.f32.mrf.mxu0
    %v354 = vadd.f32 0.0, %v353
    %v355 = vpop.f32.mrf.mxu0
    %356 = vmatprep.mubr.f32.mxu0 0.0
    %357 = vmatmul.mubr.f32.gmra.mxu0 %v95
    %v358 = vpop.f32.mrf.mxu0
    %v359 = vadd.f32 0.0, %v358
    %v360 = vpop.f32.mrf.mxu0
    %361 = vmatprep.mubr.f32.mxu0 0.0
    %362 = vmatmul.mubr.f32.gmra.mxu0 %v98
    %v363 = vpop.f32.mrf.mxu0
    %v364 = vadd.f32 0.0, %v363
    %v365 = vpop.f32.mrf.mxu0
    %366 = vmatprep.mubr.f32.mxu0 0.0
    %367 = vmatmul.mubr.f32.gmra.mxu0 %v101
    %v368 = vpop.f32.mrf.mxu0
    %v369 = vadd.f32 0.0, %v368
    %v370 = vpop.f32.mrf.mxu0
    %371 = vmatprep.mubr.f32.mxu0 0.0
    %372 = vmatmul.mubr.f32.gmra.mxu0 %v104
    %v373 = vpop.f32.mrf.mxu0
    %v374 = vadd.f32 0.0, %v373
    %v375 = vpop.f32.mrf.mxu0
    %376 = vmatprep.mubr.f32.mxu0 0.0
    %377 = vmatmul.mubr.f32.gmra.mxu0 %v107
    %v378 = vpop.f32.mrf.mxu0
    %v379 = vadd.f32 0.0, %v378
    %v380 = vpop.f32.mrf.mxu0
    %381 = vmatprep.mubr.f32.mxu0 0.0
    %382 = vmatmul.mubr.f32.gmra.mxu0 %v110
    %v383 = vpop.f32.mrf.mxu0
    %v384 = vadd.f32 0.0, %v383
    %v385 = vpop.f32.mrf.mxu0
    %386 = vmatprep.mubr.f32.mxu0 0.0
    %387 = vmatmul.mubr.f32.gmra.mxu0 %v113
    %v388 = vpop.f32.mrf.mxu0
    %v389 = vadd.f32 0.0, %v388
    %v390 = vpop.f32.mrf.mxu0
    %391 = vmatprep.mubr.f32.mxu0 0.0
    %392 = vmatmul.mubr.f32.gmra.mxu0 %v116
    %v393 = vpop.f32.mrf.mxu0
    %v394 = vadd.f32 0.0, %v393
    %v395 = vpop.f32.mrf.mxu0
    %396 = vmatprep.mubr.f32.mxu0 0.0
    %397 = vmatmul.mubr.f32.gmra.mxu0 %v119
    %v398 = vpop.f32.mrf.mxu0
    %v399 = vadd.f32 0.0, %v398
    %v400 = vpop.f32.mrf.mxu0
    %401 = vmatprep.mubr.f32.mxu0 0.0
    %402 = vmatmul.mubr.f32.gmra.mxu0 %v122
    %v403 = vpop.f32.mrf.mxu0
    %v404 = vadd.f32 0.0, %v403
    %v405 = vpop.f32.mrf.mxu0
    %406 = vmatprep.mubr.f32.mxu0 0.0
    %407 = vmatmul.mubr.f32.gmra.mxu0 %v125
    %v408 = vpop.f32.mrf.mxu0
    %v409 = vadd.f32 0.0, %v408
    %v410 = vpop.f32.mrf.mxu0
    %411 = vmatprep.mubr.f32.mxu0 0.0
    %412 = vmatmul.mubr.f32.gmra.mxu0 %v128
    %v413 = vpop.f32.mrf.mxu0
    %v414 = vadd.f32 0.0, %v413
    %v415 = vpop.f32.mrf.mxu0
    %416 = vmatprep.mubr.f32.mxu0 0.0
    %417 = vmatmul.mubr.f32.gmra.mxu0 %v131
    %v418 = vpop.f32.mrf.mxu0
    %v419 = vadd.f32 0.0, %v418
    %v420 = vpop.f32.mrf.mxu0
    %421 = vmatprep.mubr.f32.mxu0 0.0
    %422 = vmatmul.mubr.f32.gmra.mxu0 %v134
    %v423 = vpop.f32.mrf.mxu0
    %v424 = vadd.f32 0.0, %v423
    %v425 = vpop.f32.mrf.mxu0
    %426 = vmatprep.mubr.f32.mxu0 0.0
    %427 = vmatmul.mubr.f32.gmra.mxu0 %v137
    %v428 = vpop.f32.mrf.mxu0
    %v429 = vadd.f32 0.0, %v428
    %v430 = vpop.f32.mrf.mxu0
    %431 = vmatprep.mubr.f32.mxu0 0.0
    %432 = vmatmul.mubr.f32.gmra.mxu0 %v140
    %v433 = vpop.f32.mrf.mxu0
    %v434 = vadd.f32 0.0, %v433
    %v435 = vpop.f32.mrf.mxu0
    %436 = vmatprep.mubr.f32.mxu0 0.0
    %437 = vmatmul.mubr.f32.gmra.mxu0 %v143
    %v438 = vpop.f32.mrf.mxu0
    %v439 = vadd.f32 0.0, %v438
    %v440 = vpop.f32.mrf.mxu0
    %441 = vmatprep.mubr.f32.mxu0 0.0
    %442 = vmatmul.mubr.f32.gmra.mxu0 %v146
    %v443 = vpop.f32.mrf.mxu0
    %v444 = vadd.f32 0.0, %v443
    %v445 = vpop.f32.mrf.mxu0
    %446 = vmatprep.mubr.f32.mxu0 0.0
    %447 = vmatmul.mubr.f32.gmra.mxu0 %v149
    %v448 = vpop.f32.mrf.mxu0
    %v449 = vadd.f32 0.0, %v448
    %v450 = vpop.f32.mrf.mxu0
    %451 = vmatprep.mubr.f32.mxu0 0.0
    %452 = vmatmul.mubr.f32.gmra.mxu0 %v152
    %v453 = vpop.f32.mrf.mxu0
    %v454 = vadd.f32 0.0, %v453
    %v455 = vpop.f32.mrf.mxu0
    %456 = vmatprep.mubr.f32.mxu0 0.0
    %457 = vmatmul.mubr.f32.gmra.mxu0 %v155
    %v458 = vpop.f32.mrf.mxu0
    %v459 = vadd.f32 0.0, %v458
    %v460 = vpop.f32.mrf.mxu0
    %461 = vmatprep.mubr.f32.mxu0 0.0
    %462 = vmatmul.mubr.f32.gmra.mxu0 %v158
    %v463 = vpop.f32.mrf.mxu0
    %v464 = vadd.f32 0.0, %v463
    %v465 = vpop.f32.mrf.mxu0
    %466 = vmatprep.mubr.f32.mxu0 0.0
    %467 = vmatmul.mubr.f32.gmra.mxu0 %v161
    %v468 = vpop.f32.mrf.mxu0
    %v469 = vadd.f32 0.0, %v468
    %v470 = vpop.f32.mrf.mxu0
    %471 = vmatprep.mubr.f32.mxu0 0.0
    %472 = vmatmul.mubr.f32.gmra.mxu0 %v164
    %v473 = vpop.f32.mrf.mxu0
    %v474 = vadd.f32 0.0, %v473
    %v475 = vpop.f32.mrf.mxu0
    %476 = vmatprep.mubr.f32.mxu0 0.0
    %477 = vmatmul.mubr.f32.gmra.mxu0 %v167
    %v478 = vpop.f32.mrf.mxu0
    %v479 = vadd.f32 0.0, %v478
    %v480 = vpop.f32.mrf.mxu0
    %481 = vmatprep.mubr.f32.mxu0 0.0
    %482 = vmatmul.mubr.f32.gmra.mxu0 %v170
    %v483 = vpop.f32.mrf.mxu0
    %v484 = vadd.f32 0.0, %v483
    %v485 = vpop.f32.mrf.mxu0
    %486 = vmatprep.mubr.f32.mxu0 0.0
    %487 = vmatmul.mubr.f32.gmra.mxu0 %v173
    %v488 = vpop.f32.mrf.mxu0
    %v489 = vadd.f32 0.0, %v488
    %v490 = vpop.f32.mrf.mxu0
    %491 = vmatprep.mubr.f32.mxu0 0.0
    %492 = vmatmul.mubr.f32.gmra.mxu0 %v176
    %v493 = vpop.f32.mrf.mxu0
    %v494 = vadd.f32 0.0, %v493
    %v495 = vpop.f32.mrf.mxu0
    %496 = vmatprep.mubr.f32.mxu0 0.0
    %497 = vmatmul.mubr.f32.gmra.mxu0 %v179
    %v498 = vpop.f32.mrf.mxu0
    %v499 = vadd.f32 0.0, %v498
    %v500 = vpop.f32.mrf.mxu0
    %501 = vmatprep.mubr.f32.mxu0 0.0
    %502 = vmatmul.mubr.f32.gmra.mxu0 %v182
    %v503 = vpop.f32.mrf.mxu0
    %v504 = vadd.f32 0.0, %v503
    %v505 = vpop.f32.mrf.mxu0
    %506 = vmatprep.mubr.f32.mxu0 0.0
    %507 = vmatmul.mubr.f32.gmra.mxu0 %v185
    %v508 = vpop.f32.mrf.mxu0
    %v509 = vadd.f32 0.0, %v508
    %v510 = vpop.f32.mrf.mxu0
    %511 = vmatprep.mubr.f32.mxu0 0.0
    %512 = vmatmul.mubr.f32.gmra.mxu0 %v188
    %v513 = vpop.f32.mrf.mxu0
    %v514 = vadd.f32 0.0, %v513
    %v515 = vpop.f32.mrf.mxu0
    %516 = vmatprep.mubr.f32.mxu0 0.0
    %517 = vmatmul.mubr.f32.gmra.mxu0 %v191
    %v518 = vpop.f32.mrf.mxu0
    %v519 = vadd.f32 0.0, %v518
    %v520 = vpop.f32.mrf.mxu0
    %521 = vmatprep.mubr.f32.mxu0 0.0
    %522 = vmatmul.mubr.f32.gmra.mxu0 %v194
    %v523 = vpop.f32.mrf.mxu0
    %v524 = vadd.f32 0.0, %v523
    %v525 = vpop.f32.mrf.mxu0
    %526 = vmatprep.mubr.f32.mxu0 0.0
    %527 = vmatmul.mubr.f32.gmra.mxu0 %v197
    %v528 = vpop.f32.mrf.mxu0
    %v529 = vadd.f32 0.0, %v528
    %v530 = vpop.f32.mrf.mxu0
    %531 = vmatprep.mubr.f32.mxu0 0.0
    %532 = vmatmul.mubr.f32.gmra.mxu0 %v200
    %v533 = vpop.f32.mrf.mxu0
    %v534 = vadd.f32 0.0, %v533
    %v535 = vpop.f32.mrf.mxu0
    %536 = vmatprep.mubr.f32.mxu0 0.0
    %537 = vmatmul.mubr.f32.gmra.mxu0 %v203
    %v538 = vpop.f32.mrf.mxu0
    %v539 = vadd.f32 0.0, %v538
    %v540 = vpop.f32.mrf.mxu0
    %541 = vmatprep.mubr.f32.mxu0 0.0
    %542 = vmatmul.mubr.f32.gmra.mxu0 %v206
    %v543 = vpop.f32.mrf.mxu0
    %v544 = vadd.f32 0.0, %v543
    %v545 = vpop.f32.mrf.mxu0
    %546 = vmatprep.mubr.f32.mxu0 0.0
    %547 = vmatmul.mubr.f32.gmra.mxu0 %v209
    %v548 = vpop.f32.mrf.mxu0
    %v549 = vadd.f32 0.0, %v548
    %v550 = vpop.f32.mrf.mxu0
    %551 = vmatprep.mubr.f32.mxu0 0.0
    %552 = vmatmul.mubr.f32.gmra.mxu0 %v212
    %v553 = vpop.f32.mrf.mxu0
    %v554 = vadd.f32 0.0, %v553
    %v555 = vpop.f32.mrf.mxu0
    %556 = vmatprep.mubr.f32.mxu0 0.0
    %557 = vmatmul.mubr.f32.gmra.mxu0 %v215
    %v558 = vpop.f32.mrf.mxu0
    %v559 = vadd.f32 0.0, %v558
    %v560 = vpop.f32.mrf.mxu0
    %561 = vmatprep.mubr.f32.mxu0 0.0
    %562 = vmatmul.mubr.f32.gmra.mxu0 %v218
    %v563 = vpop.f32.mrf.mxu0
    %v564 = vadd.f32 0.0, %v563
    %v565 = vpop.f32.mrf.mxu0
    %566 = vmatprep.mubr.f32.mxu0 0.0
    %567 = vmatmul.mubr.f32.gmra.mxu0 %v221
    %v568 = vpop.f32.mrf.mxu0
    %v569 = vadd.f32 0.0, %v568
    %v570 = vpop.f32.mrf.mxu0
    %571 = vmatprep.mubr.f32.mxu0 0.0
    %572 = vmatmul.mubr.f32.gmra.mxu0 %v224
    %v573 = vpop.f32.mrf.mxu0
    %v574 = vadd.f32 0.0, %v573
    %v575 = vpop.f32.mrf.mxu0
    %576 = vmatprep.mubr.f32.mxu0 0.0
    %577 = vmatmul.mubr.f32.gmra.mxu0 %v227
    %v578 = vpop.f32.mrf.mxu0
    %v579 = vadd.f32 0.0, %v578
    %v580 = vpop.f32.mrf.mxu0
    %581 = vmatprep.mubr.f32.mxu0 0.0
    %582 = vmatmul.mubr.f32.gmra.mxu0 %v230
    %v583 = vpop.f32.mrf.mxu0
    %v584 = vadd.f32 0.0, %v583
    %v585 = vpop.f32.mrf.mxu0
    %586 = vmatprep.mubr.f32.mxu0 0.0
    %587 = vmatmul.mubr.f32.gmra.mxu0 %v233
    %v588 = vpop.f32.mrf.mxu0
    %v589 = vadd.f32 0.0, %v588
    %v590 = vpop.f32.mrf.mxu0
    %591 = vmatprep.mubr.f32.mxu0 0.0
    %592 = vmatmul.mubr.f32.gmra.mxu0 %v236
    %v593 = vpop.f32.mrf.mxu0
    %v594 = vadd.f32 0.0, %v593
    %v595 = vpop.f32.mrf.mxu0
    %596 = vmatprep.mubr.f32.mxu0 0.0
    %597 = vmatmul.mubr.f32.gmra.mxu0 %v239
    %v598 = vpop.f32.mrf.mxu0
    %v599 = vadd.f32 0.0, %v598
    %v600 = vpop.f32.mrf.mxu0
    %601 = vmatprep.mubr.f32.mxu0 0.0
    %602 = vmatmul.mubr.f32.gmra.mxu0 %v242
    %v603 = vpop.f32.mrf.mxu0
    %v604 = vadd.f32 0.0, %v603
    %v605 = vpop.f32.mrf.mxu0
    %606 = vmatprep.mubr.f32.mxu0 0.0
    %607 = vmatmul.mubr.f32.gmra.mxu0 %v245
    %v608 = vpop.f32.mrf.mxu0
    %v609 = vadd.f32 0.0, %v608
    %v610 = vpop.f32.mrf.mxu0
    %611 = vmatprep.mubr.f32.mxu0 0.0
    %612 = vmatmul.mubr.f32.gmra.mxu0 %v248
    %v613 = vpop.f32.mrf.mxu0
    %v614 = vadd.f32 0.0, %v613
    %v615 = vpop.f32.mrf.mxu0
    %616 = vmatprep.mubr.f32.mxu0 0.0
    %617 = vmatmul.mubr.f32.gmra.mxu0 %v251
    %v618 = vpop.f32.mrf.mxu0
    %v619 = vadd.f32 0.0, %v618
    %v620 = vpop.f32.mrf.mxu0
    %621 = vmatprep.mubr.f32.mxu0 0.0
    %622 = vmatmul.mubr.f32.gmra.mxu0 %v254
    %v623 = vpop.f32.mrf.mxu0
    %v624 = vadd.f32 0.0, %v623
    %v625 = vpop.f32.mrf.mxu0
    %626 = vmatprep.mubr.f32.mxu0 0.0
    %627 = vmatmul.mubr.f32.gmra.mxu0 %v257
    %v628 = vpop.f32.mrf.mxu0
    %v629 = vadd.f32 0.0, %v628
    %v630 = vpop.f32.mrf.mxu0
    %631 = vmatprep.mubr.f32.mxu0 0.0
    %632 = vmatmul.mubr.f32.gmra.mxu0 %v260
    %v633 = vpop.f32.mrf.mxu0
    %v634 = vadd.f32 0.0, %v633
    %v635 = vpop.f32.mrf.mxu0
    %636 = vmatprep.mubr.f32.mxu0 0.0
    %637 = vmatmul.mubr.f32.gmra.mxu0 %v263
    %v638 = vpop.f32.mrf.mxu0
    %v639 = vadd.f32 0.0, %v638
    %v640 = vpop.f32.mrf.mxu0
    %641 = vmatprep.mubr.f32.mxu0 0.0
    %642 = vmatmul.mubr.f32.gmra.mxu0 %v266
    %v643 = vpop.f32.mrf.mxu0
    %v644 = vadd.f32 0.0, %v643
    %v645 = vpop.f32.mrf.mxu0
    %646 = vmatprep.mubr.f32.mxu0 0.0
    %647 = vmatmul.mubr.f32.gmra.mxu0 %v269
    %v648 = vpop.f32.mrf.mxu0
    %v649 = vadd.f32 0.0, %v648
    %v650 = vpop.f32.mrf.mxu0
    %651 = vmatprep.mubr.f32.mxu0 0.0
    %652 = vmatmul.mubr.f32.gmra.mxu0 %v272
    %v653 = vpop.f32.mrf.mxu0
    %v654 = vadd.f32 0.0, %v653
    %v655 = vpop.f32.mrf.mxu0
    %656 = vmatprep.mubr.f32.mxu0 0.0
    %657 = vmatmul.mubr.f32.gmra.mxu0 %v275
    %v658 = vpop.f32.mrf.mxu0
    %v659 = vadd.f32 0.0, %v658
    %v660 = vpop.f32.mrf.mxu0
    %661 = vmatprep.mubr.f32.mxu0 0.0
    %662 = vmatmul.mubr.f32.gmra.mxu0 %v278
    %v663 = vpop.f32.mrf.mxu0
    %v664 = vadd.f32 0.0, %v663
    %v665 = vpop.f32.mrf.mxu0
    %666 = vmatprep.mubr.f32.mxu0 0.0
    %667 = vmatmul.mubr.f32.gmra.mxu0 %v281
    %v668 = vpop.f32.mrf.mxu0
    %v669 = vadd.f32 0.0, %v668
    %v670 = vpop.f32.mrf.mxu0
    %671 = vdwg.mxu0
    %v672 = vmax.f32 %v354, 0.0
    %v673 = vmax.f32 %v359, 0.0
    %v674 = vmax.f32 %v364, 0.0
    %v675 = vmax.f32 %v369, 0.0
    %v676 = vmax.f32 %v374, 0.0
    %v677 = vmax.f32 %v379, 0.0
    %v678 = vmax.f32 %v384, 0.0
    %v679 = vmax.f32 %v389, 0.0
    %v680 = vmax.f32 %v394, 0.0
    %v681 = vmax.f32 %v399, 0.0
    %v682 = vmax.f32 %v404, 0.0
    %v683 = vmax.f32 %v409, 0.0
    %v684 = vmax.f32 %v414, 0.0
    %v685 = vmax.f32 %v419, 0.0
    %v686 = vmax.f32 %v424, 0.0
    %v687 = vmax.f32 %v429, 0.0
    %v688 = vmax.f32 %v434, 0.0
    %v689 = vmax.f32 %v439, 0.0
    %v690 = vmax.f32 %v444, 0.0
    %v691 = vmax.f32 %v449, 0.0
    %v692 = vmax.f32 %v454, 0.0
    %v693 = vmax.f32 %v459, 0.0
    %v694 = vmax.f32 %v464, 0.0
    %v695 = vmax.f32 %v469, 0.0
    %v696 = vmax.f32 %v474, 0.0
    %v697 = vmax.f32 %v479, 0.0
    %v698 = vmax.f32 %v484, 0.0
    %v699 = vmax.f32 %v489, 0.0
    %v700 = vmax.f32 %v494, 0.0
    %v701 = vmax.f32 %v499, 0.0
    %v702 = vmax.f32 %v504, 0.0
    %v703 = vmax.f32 %v509, 0.0
    %v704 = vmax.f32 %v514, 0.0
    %v705 = vmax.f32 %v519, 0.0
    %v706 = vmax.f32 %v524, 0.0
    %v707 = vmax.f32 %v529, 0.0
    %v708 = vmax.f32 %v534, 0.0
    %v709 = vmax.f32 %v539, 0.0
    %v710 = vmax.f32 %v544, 0.0
    %v711 = vmax.f32 %v549, 0.0
    %v712 = vmax.f32 %v554, 0.0
    %v713 = vmax.f32 %v559, 0.0
    %v714 = vmax.f32 %v564, 0.0
    %v715 = vmax.f32 %v569, 0.0
    %v716 = vmax.f32 %v574, 0.0
    %v717 = vmax.f32 %v579, 0.0
    %v718 = vmax.f32 %v584, 0.0
    %v719 = vmax.f32 %v589, 0.0
    %v720 = vmax.f32 %v594, 0.0
    %v721 = vmax.f32 %v599, 0.0
    %v722 = vmax.f32 %v604, 0.0
    %v723 = vmax.f32 %v609, 0.0
    %v724 = vmax.f32 %v614, 0.0
    %v725 = vmax.f32 %v619, 0.0
    %v726 = vmax.f32 %v624, 0.0
    %v727 = vmax.f32 %v629, 0.0
    %v728 = vmax.f32 %v634, 0.0
    %v729 = vmax.f32 %v639, 0.0
    %v730 = vmax.f32 %v644, 0.0
    %v731 = vmax.f32 %v649, 0.0
    %v732 = vmax.f32 %v654, 0.0
    %v733 = vmax.f32 %v659, 0.0
    %v734 = vmax.f32 %v664, 0.0
    %v735 = vmax.f32 %v669, 0.0
    %v736 = vld [vmem:[%s2] sm:$0xff]
    %v738 = vcombine.high %v736, %v736
    %v740 = vunpack.c.l.s4 1983009808
    %v741 = vunpack.c.0.s8 %v740
    %v742 = vlaneseq
    %v743 = vshrl.u32 %v742, 7
    %v744 = vsub.s32 %v741, %v743
    %v745 = vrot.slane %v736, %v744
    %v747 = vunpack.c.l.s4 1983009808
    %v748 = vunpack.c.0.s8 %v747
    %v749 = vlaneseq
    %v750 = vshrl.u32 %v749, 7
    %v751 = vsub.s32 %v748, %v750
    %v752 = vrot.slane %v738, %v751
    %v753 = vcombine.high %v745, %v745
    %v754 = vcombine.high %v752, %v752
    %759 = vmatprep.subr.mxu0 0.0
    %760 = vmatpush1.msra.mxu0 %v687
    %761 = vmatprep.subr.mxu0 0.0
    %762 = vmatpush1.msra.mxu0 %v686
    %763 = vmatprep.subr.mxu0 0.0
    %764 = vmatpush1.msra.mxu0 %v685
    %765 = vmatprep.subr.mxu0 0.0
    %766 = vmatpush1.msra.mxu0 %v684
    %767 = vmatprep.subr.mxu0 0.0
    %768 = vmatpush1.msra.mxu0 %v683
    %769 = vmatprep.subr.mxu0 0.0
    %770 = vmatpush1.msra.mxu0 %v682
    %771 = vmatprep.subr.mxu0 0.0
    %772 = vmatpush1.msra.mxu0 %v681
    %773 = vmatprep.subr.mxu0 0.0
    %774 = vmatpush1.msra.mxu0 %v680
    %775 = vmatprep.subr.mxu0 0.0
    %776 = vmatpush1.msra.mxu0 %v679
    %777 = vmatprep.subr.mxu0 0.0
    %778 = vmatpush1.msra.mxu0 %v678
    %779 = vmatprep.subr.mxu0 0.0
    %780 = vmatpush1.msra.mxu0 %v677
    %781 = vmatprep.subr.mxu0 0.0
    %782 = vmatpush1.msra.mxu0 %v676
    %783 = vmatprep.subr.mxu0 0.0
    %784 = vmatpush1.msra.mxu0 %v675
    %785 = vmatprep.subr.mxu0 0.0
    %786 = vmatpush1.msra.mxu0 %v674
    %787 = vmatprep.subr.mxu0 0.0
    %788 = vmatpush1.msra.mxu0 %v673
    %789 = vmatprep.subr.mxu0 0.0
    %790 = vmatpush1.msra.mxu0 %v672
    %791 = vmatprep.subr.mxu0 0.0
    %792 = vmatpush2.msra.mxu0 %v703
    %793 = vmatprep.subr.mxu0 0.0
    %794 = vmatpush2.msra.mxu0 %v702
    %795 = vmatprep.subr.mxu0 0.0
    %796 = vmatpush2.msra.mxu0 %v701
    %797 = vmatprep.subr.mxu0 0.0
    %798 = vmatpush2.msra.mxu0 %v700
    %799 = vmatprep.subr.mxu0 0.0
    %800 = vmatpush2.msra.mxu0 %v699
    %801 = vmatprep.subr.mxu0 0.0
    %802 = vmatpush2.msra.mxu0 %v698
    %803 = vmatprep.subr.mxu0 0.0
    %804 = vmatpush2.msra.mxu0 %v697
    %805 = vmatprep.subr.mxu0 0.0
    %806 = vmatpush2.msra.mxu0 %v696
    %807 = vmatprep.subr.mxu0 0.0
    %808 = vmatpush2.msra.mxu0 %v695
    %809 = vmatprep.subr.mxu0 0.0
    %810 = vmatpush2.msra.mxu0 %v694
    %811 = vmatprep.subr.mxu0 0.0
    %812 = vmatpush2.msra.mxu0 %v693
    %813 = vmatprep.subr.mxu0 0.0
    %814 = vmatpush2.msra.mxu0 %v692
    %815 = vmatprep.subr.mxu0 0.0
    %816 = vmatpush2.msra.mxu0 %v691
    %817 = vmatprep.subr.mxu0 0.0
    %818 = vmatpush2.msra.mxu0 %v690
    %819 = vmatprep.subr.mxu0 0.0
    %820 = vmatpush2.msra.mxu0 %v689
    %821 = vmatprep.subr.mxu0 0.0
    %822 = vmatpush2.msra.mxu0 %v688
    %823 = vmatprep.mubr.f32.mxu0 %v753
    %824 = vmatmul.mubr.f32.gmra.mxu0 %v745
    %v825 = vpop.f32.mrf.mxu0
    %v826 = vadd.f32 0.0, %v825
    %v827 = vpop.f32.mrf.mxu0
    %828 = vdwg.mxu0
    %829 = vmatprep.subr.mxu0 0.0
    %830 = vmatpush1.msra.mxu0 %v719
    %831 = vmatprep.subr.mxu0 0.0
    %832 = vmatpush1.msra.mxu0 %v718
    %833 = vmatprep.subr.mxu0 0.0
    %834 = vmatpush1.msra.mxu0 %v717
    %835 = vmatprep.subr.mxu0 0.0
    %836 = vmatpush1.msra.mxu0 %v716
    %837 = vmatprep.subr.mxu0 0.0
    %838 = vmatpush1.msra.mxu0 %v715
    %839 = vmatprep.subr.mxu0 0.0
    %840 = vmatpush1.msra.mxu0 %v714
    %841 = vmatprep.subr.mxu0 0.0
    %842 = vmatpush1.msra.mxu0 %v713
    %843 = vmatprep.subr.mxu0 0.0
    %844 = vmatpush1.msra.mxu0 %v712
    %845 = vmatprep.subr.mxu0 0.0
    %846 = vmatpush1.msra.mxu0 %v711
    %847 = vmatprep.subr.mxu0 0.0
    %848 = vmatpush1.msra.mxu0 %v710
    %849 = vmatprep.subr.mxu0 0.0
    %850 = vmatpush1.msra.mxu0 %v709
    %851 = vmatprep.subr.mxu0 0.0
    %852 = vmatpush1.msra.mxu0 %v708
    %853 = vmatprep.subr.mxu0 0.0
    %854 = vmatpush1.msra.mxu0 %v707
    %855 = vmatprep.subr.mxu0 0.0
    %856 = vmatpush1.msra.mxu0 %v706
    %857 = vmatprep.subr.mxu0 0.0
    %858 = vmatpush1.msra.mxu0 %v705
    %859 = vmatprep.subr.mxu0 0.0
    %860 = vmatpush1.msra.mxu0 %v704
    %861 = vmatprep.subr.mxu0 0.0
    %862 = vmatpush2.msra.mxu0 %v735
    %863 = vmatprep.subr.mxu0 0.0
    %864 = vmatpush2.msra.mxu0 %v734
    %865 = vmatprep.subr.mxu0 0.0
    %866 = vmatpush2.msra.mxu0 %v733
    %867 = vmatprep.subr.mxu0 0.0
    %868 = vmatpush2.msra.mxu0 %v732
    %869 = vmatprep.subr.mxu0 0.0
    %870 = vmatpush2.msra.mxu0 %v731
    %871 = vmatprep.subr.mxu0 0.0
    %872 = vmatpush2.msra.mxu0 %v730
    %873 = vmatprep.subr.mxu0 0.0
    %874 = vmatpush2.msra.mxu0 %v729
    %875 = vmatprep.subr.mxu0 0.0
    %876 = vmatpush2.msra.mxu0 %v728
    %877 = vmatprep.subr.mxu0 0.0
    %878 = vmatpush2.msra.mxu0 %v727
    %879 = vmatprep.subr.mxu0 0.0
    %880 = vmatpush2.msra.mxu0 %v726
    %881 = vmatprep.subr.mxu0 0.0
    %882 = vmatpush2.msra.mxu0 %v725
    %883 = vmatprep.subr.mxu0 0.0
    %884 = vmatpush2.msra.mxu0 %v724
    %885 = vmatprep.subr.mxu0 0.0
    %886 = vmatpush2.msra.mxu0 %v723
    %887 = vmatprep.subr.mxu0 0.0
    %888 = vmatpush2.msra.mxu0 %v722
    %889 = vmatprep.subr.mxu0 0.0
    %890 = vmatpush2.msra.mxu0 %v721
    %891 = vmatprep.subr.mxu0 0.0
    %892 = vmatpush2.msra.mxu0 %v720
    %893 = vmatprep.mubr.f32.mxu0 %v754
    %894 = vmatmul.mubr.f32.gmra.mxu0 %v752
    %v895 = vpop.f32.mrf.mxu0
    %v896 = vadd.f32 %v826, %v895
    %v897 = vpop.f32.mrf.mxu0
    %898 = vdwg.mxu0
    %v899 = vld [vmem:[%s3] sm:$0xff]
    %v900 = vld [vmem:[%s3 + $0x8] sm:$0xff]
    %v901 = vld [vmem:[%s3 + $0x10] sm:$0xff]
    %v902 = vld [vmem:[%s3 + $0x18] sm:$0xff]
    %v903 = vld [vmem:[%s4] sm:$0x1]
    %v905 = vlaneseq
    %v906 = vshrl.u32 %v905, 7
    %v907 = vsub.s32 0, %v906
    %v908 = vrot.slane %v903, %v907
    %vm910 = vcmask 261120
    %v912 = vsel %vm910, %v896, 0
    %914 = vmatprep.subr.mxu0 0.0
    %915 = vmatpush1.msra.mxu0 0.0
    %916 = vmatprep.subr.mxu0 0.0
    %917 = vmatpush1.msra.mxu0 0.0
    %918 = vmatprep.subr.mxu0 0.0
    %919 = vmatpush1.msra.mxu0 0.0
    %920 = vmatprep.subr.mxu0 0.0
    %921 = vmatpush1.msra.mxu0 0.0
    %922 = vmatprep.subr.mxu0 0.0
    %923 = vmatpush1.msra.mxu0 0.0
    %924 = vmatprep.subr.mxu0 0.0
    %925 = vmatpush1.msra.mxu0 0.0
    %926 = vmatprep.subr.mxu0 0.0
    %927 = vmatpush1.msra.mxu0 0.0
    %928 = vmatprep.subr.mxu0 0.0
    %929 = vmatpush1.msra.mxu0 0.0
    %930 = vmatprep.subr.mxu0 0.0
    %931 = vmatpush1.msra.mxu0 0.0
    %932 = vmatprep.subr.mxu0 0.0
    %933 = vmatpush1.msra.mxu0 0.0
    %934 = vmatprep.subr.mxu0 0.0
    %935 = vmatpush1.msra.mxu0 0.0
    %936 = vmatprep.subr.mxu0 0.0
    %937 = vmatpush1.msra.mxu0 0.0
    %938 = vmatprep.subr.mxu0 0.0
    %939 = vmatpush1.msra.mxu0 %v902
    %940 = vmatprep.subr.mxu0 0.0
    %941 = vmatpush1.msra.mxu0 %v901
    %942 = vmatprep.subr.mxu0 0.0
    %943 = vmatpush1.msra.mxu0 %v900
    %944 = vmatprep.subr.mxu0 0.0
    %945 = vmatpush1.msra.mxu0 %v899
    %946 = vmatprep.subr.mxu0 0.0
    %947 = vmatpush2.msra.mxu0 0.0
    %948 = vmatprep.subr.mxu0 0.0
    %949 = vmatpush2.msra.mxu0 0.0
    %950 = vmatprep.subr.mxu0 0.0
    %951 = vmatpush2.msra.mxu0 0.0
    %952 = vmatprep.subr.mxu0 0.0
    %953 = vmatpush2.msra.mxu0 0.0
    %954 = vmatprep.subr.mxu0 0.0
    %955 = vmatpush2.msra.mxu0 0.0
    %956 = vmatprep.subr.mxu0 0.0
    %957 = vmatpush2.msra.mxu0 0.0
    %958 = vmatprep.subr.mxu0 0.0
    %959 = vmatpush2.msra.mxu0 0.0
    %960 = vmatprep.subr.mxu0 0.0
    %961 = vmatpush2.msra.mxu0 0.0
    %962 = vmatprep.subr.mxu0 0.0
    %963 = vmatpush2.msra.mxu0 0.0
    %964 = vmatprep.subr.mxu0 0.0
    %965 = vmatpush2.msra.mxu0 0.0
    %966 = vmatprep.subr.mxu0 0.0
    %967 = vmatpush2.msra.mxu0 0.0
    %968 = vmatprep.subr.mxu0 0.0
    %969 = vmatpush2.msra.mxu0 0.0
    %970 = vmatprep.subr.mxu0 0.0
    %971 = vmatpush2.msra.mxu0 0.0
    %972 = vmatprep.subr.mxu0 0.0
    %973 = vmatpush2.msra.mxu0 0.0
    %974 = vmatprep.subr.mxu0 0.0
    %975 = vmatpush2.msra.mxu0 0.0
    %976 = vmatprep.subr.mxu0 0.0
    %977 = vmatpush2.msra.mxu0 0.0
    %978 = vmatprep.mubr.f32.mxu0 0.0
    %979 = vmatmul.mubr.f32.gmra.mxu0 %v912
    %v980 = vpop.f32.mrf.mxu0
    %v981 = vadd.f32 %v908, %v980
    %v982 = vpop.f32.mrf.mxu0
    %983 = vdwg.mxu0
    %984 = vst [vmem:[#allocation2] sm:$0x3] %v981
    // Predicated region
    $region22: #{timm_forward.1} parent=1 // pred_check
      _
    $region23: #{timm_forward.1} parent=1 // pred_check_branch
      %986 = sbr.rel (0) target = $region25
    $region24: #{timm_forward.1} parent=1 // pred_region
      %s988 = ssub.s32 32, 32
      %989 = vsyncadd [#allocation3], %s988
      %s991 = sshll.u32 [#allocation2], 4
      %s992 = int_to_ptr.vmem [resolvable:$true] %s991
      %994 = dma.vmem_to_hbm [thread:$0]  %s992, 32, %s5, [#allocation3]
    $region25: #{timm_forward.1} parent=1 // pred_fallthru
      _
    // Predicated region
    $region26: #{timm_forward.1} parent=1 // pred_check
      _
    $region27: #{timm_forward.1} parent=1 // pred_check_branch
      %996 = sbr.rel (0) target = $region29
    $region28: #{timm_forward.1} parent=1 // pred_region
      %997 = dma.done [#allocation3], 32
    $region29: #{timm_forward.1} parent=1 // pred_fallthru
      _
    %998 = vsyncpa [#allocation3], 1

</llo_original>
